<compile_context>
chip_gen: v6e
topology: v6e:2x2x1
jax: 0.10.0
libtpu: 0.0.40
codegen_flags: <defaults>
</compile_context>

<pallas_src>
import jax
import jax.numpy as jnp
from jax.experimental import pallas as pl
from jax.experimental.pallas import tpu as pltpu

MIN_VALUE = -3.610921458183803
MAX_VALUE = -2.613650681131714

H_IN, W_IN = 11, 11
H_OUT, W_OUT = 22, 22
C_IN, C_MID1, C_MID2, C_OUT = 9, 12, 33, 8
S = H_IN * W_IN            # 121 spatial positions of the (pre-upsample) grid
S_PAD = 128                # lane-padded spatial (K dim of the expansion matmul)
K_PAD = 16                 # sublane-padded input-channel count (K dim of first matmul)
K_TAPS = 4                 # 2x2 transposed-conv taps (non-overlapping at stride==kernel)
L_OUT = H_OUT * W_OUT      # 484 final spatial positions (row-major 22x22)


def _fused_kernel(w_ref, b_ref, g_ref, m_ref, x_ref, o_ref):
    """Fused 3-stage affine + tap interleave + clamp.

    w_ref: (32, 16)  fused weights, row = 8*tap + out_channel (cols 9..15 are zero)
    b_ref: (8, 1)    fused bias per output channel
    g_ref: (128,484) one-hot lane-expansion matrix: G[s, l] = 1 iff s == src_spatial(l)
    m_ref: (4, 484)  per-lane tap-selection masks (0/1)
    x_ref: (16,128)  input pixels (channels x spatial), zero padded
    o_ref: (1, 8, 484) clamped output in final row-major 22x22 order
    """
    # (32,16) @ (16,128): per-tap, per-channel pre-bias outputs over the 11x11 grid.
    mm = jnp.dot(w_ref[...], x_ref[...], preferred_element_type=jnp.float32)
    # (32,128) @ (128,484): one-hot lane expansion to final 22x22 row-major lane order.
    z = jnp.dot(mm, g_ref[...], preferred_element_type=jnp.float32)
    # Per-lane tap selection (VPU): pick the right 8-row block for each output lane.
    m = m_ref[...]
    sel = (m[0:1, :] * z[0 * C_OUT:1 * C_OUT, :]
           + m[1:2, :] * z[1 * C_OUT:2 * C_OUT, :]
           + m[2:3, :] * z[2 * C_OUT:3 * C_OUT, :]
           + m[3:4, :] * z[3 * C_OUT:4 * C_OUT, :])
    o_ref[0] = jnp.clip(sel + b_ref[...], MIN_VALUE, MAX_VALUE)


def prepare_params(W1, b1, W2, b2, W3, b3):
    """One-time fold of the three affine stages + the interleave constants."""
    W2m = W2[:, :, 0, 0]                                            # (C_MID1, C_MID2)
    W3m = W3[:, :, 0]                                               # (C_MID2, C_OUT)
    # taps ordered k = 2*ki + kj
    w1_taps = jnp.transpose(W1, (2, 3, 0, 1)).reshape(K_TAPS, C_IN, C_MID1)
    w_fused = jnp.einsum("kcm,mn,no->kco", w1_taps, W2m, W3m)       # (4, C_IN, C_OUT)
    b_fused = (b1 @ W2m + b2) @ W3m + b3                            # (C_OUT,)
    W_big = jnp.transpose(w_fused, (0, 2, 1)).reshape(K_TAPS * C_OUT, C_IN)   # (32, 9)
    W_big = jnp.pad(W_big, ((0, 0), (0, K_PAD - C_IN))).astype(jnp.float32)   # (32, 16)
    b_col = b_fused.reshape(C_OUT, 1).astype(jnp.float32)                     # (8, 1)

    # Final lane l = i2*22 + j2 (row-major 22x22). Source spatial index and tap id:
    l = jnp.arange(L_OUT)
    i2, j2 = l // W_OUT, l % W_OUT
    s_l = (i2 // 2) * W_IN + (j2 // 2)              # (484,) source index in 11x11 grid
    tap_l = 2 * (i2 % 2) + (j2 % 2)                 # (484,) which 2x2 tap feeds lane l
    G = (jnp.arange(S_PAD)[:, None] == s_l[None, :]).astype(jnp.float32)       # (128,484)
    tap_mask = (jnp.arange(K_TAPS)[:, None] == tap_l[None, :]).astype(jnp.float32)  # (4,484)
    return W_big, b_col, G, tap_mask


@jax.jit
def model_forward(x1, params):
    """x1: (1, C_IN, 11, 11) NCHW.  Returns (1, C_OUT, 484)."""
    W_big, b_col, G, tap_mask = params
    # NCHW -> (C_IN, S); zero-pad to (16, 128) so both matmul K dims are tile-aligned
    # and the padding content is well-defined zeros.
    x_pad = jnp.pad(x1.reshape(C_IN, S), ((0, K_PAD - C_IN), (0, S_PAD - S)))

    flops = 2 * 32 * K_PAD * S_PAD + 2 * 32 * S_PAD * L_OUT
    bytes_acc = 4 * (32 * K_PAD + C_OUT + S_PAD * L_OUT + K_TAPS * L_OUT
                     + K_PAD * S_PAD + C_OUT * L_OUT)

    vmem = pl.BlockSpec(memory_space=pltpu.MemorySpace.VMEM)
    out = pl.pallas_call(
        _fused_kernel,
        out_shape=jax.ShapeDtypeStruct((1, C_OUT, L_OUT), jnp.float32),
        in_specs=[vmem, vmem, vmem, vmem, vmem],
        out_specs=vmem,
        cost_estimate=pl.CostEstimate(flops=flops, transcendentals=0,
                                      bytes_accessed=bytes_acc),
    )(W_big, b_col, G, tap_mask, x_pad)
    return out                                      # already final layout: (1, 8, 484)


def reference_forward(x1, W1, b1, W2, b2, W3, b3):
    """Pure-jnp reference mirroring the PyTorch semantics."""
    x = x1[0]                                                      # (C_IN, 11, 11)
    v1 = jnp.einsum("cij,cokl->oikjl", x, W1).reshape(C_MID1, 22, 22) + b1[:, None, None]
    v2 = jnp.einsum("cij,co->oij", v1, W2[:, :, 0, 0]) + b2[:, None, None]
    v2f = v2.reshape(C_MID2, 22 * 22)
    v3 = jnp.einsum("cl,co->ol", v2f, W3[:, :, 0]) + b3[:, None]
    return jnp.clip(v3, MIN_VALUE, MAX_VALUE)[None]


if __name__ == "__main__":
    key = jax.random.PRNGKey(0)
    ks = jax.random.split(key, 7)
    x1 = jax.random.normal(ks[0], (1, C_IN, H_IN, W_IN), dtype=jnp.float32)
    # Deterministic parameter init (shapes follow PyTorch ConvTranspose conventions).
    # 0.4 scale puts a useful fraction of outputs strictly inside the clamp window so
    # the interleave / selection logic is actually exercised by the check below.
    W1 = 0.4 * jax.random.normal(ks[1], (C_IN, C_MID1, 2, 2), dtype=jnp.float32)
    b1 = 0.4 * jax.random.normal(ks[2], (C_MID1,), dtype=jnp.float32)
    W2 = 0.4 * jax.random.normal(ks[3], (C_MID1, C_MID2, 1, 1), dtype=jnp.float32)
    b2 = 0.4 * jax.random.normal(ks[4], (C_MID2,), dtype=jnp.float32)
    W3 = 0.4 * jax.random.normal(ks[5], (C_MID2, C_OUT, 1), dtype=jnp.float32)
    b3 = 0.4 * jax.random.normal(ks[6], (C_OUT,), dtype=jnp.float32)

    # One-time init-path weight/constant composition (cached across calls in real use).
    params = jax.block_until_ready(prepare_params(W1, b1, W2, b2, W3, b3))

    out = model_forward(x1, params)
    out = jax.block_until_ready(out)

    ref = reference_forward(x1, W1, b1, W2, b2, W3, b3)
    assert out.shape == (1, C_OUT, L_OUT), out.shape
    # Tolerance accounts for default (reduced-precision) MXU passes on f32 operands in
    # both the fused kernel and the sequential reference; permutation errors would show
    # up as O(1) mismatches and still be caught.
    assert jnp.allclose(out, ref, rtol=0.0, atol=5e-2), float(jnp.max(jnp.abs(out - ref)))

    print("KERNEL_OK")
</pallas_src>

<mosaic_0001>
module attributes {stable_mosaic.version = 11 : i64} {
  func.func @_fused_kernel(%arg0: memref<32x16xf32, #tpu.memory_space<vmem>>, %arg1: memref<8x1xf32, #tpu.memory_space<vmem>>, %arg2: memref<128x484xf32, #tpu.memory_space<vmem>>, %arg3: memref<4x484xf32, #tpu.memory_space<vmem>>, %arg4: memref<16x128xf32, #tpu.memory_space<vmem>>, %arg5: memref<1x8x484xf32, #tpu.memory_space<vmem>>) attributes {dimension_semantics = [], scalar_prefetch = 0 : i64, scratch_operands = 0 : i64, tpu.core_type = #tpu.core_type<tc>} {
    %c0 = arith.constant 0 : index
    %c0_0 = arith.constant 0 : index
    %0 = vector.load %arg0[%c0, %c0_0] : memref<32x16xf32, #tpu.memory_space<vmem>>, vector<32x16xf32>
    %c0_1 = arith.constant 0 : index
    %c0_2 = arith.constant 0 : index
    %1 = vector.load %arg4[%c0_1, %c0_2] : memref<16x128xf32, #tpu.memory_space<vmem>>, vector<16x128xf32>
    %cst = arith.constant dense<0.000000e+00> : vector<32x128xf32>
    %2 = tpu.matmul %0, %1, %cst {dimension_numbers = #tpu.dot_dimension_numbers<[1], [0], [0], [1], [0, 0, 1, 1], [], []>} : vector<32x16xf32>, vector<16x128xf32>, vector<32x128xf32> -> vector<32x128xf32>
    %c0_3 = arith.constant 0 : index
    %c0_4 = arith.constant 0 : index
    %3 = vector.load %arg2[%c0_3, %c0_4] : memref<128x484xf32, #tpu.memory_space<vmem>>, vector<128x484xf32>
    %cst_5 = arith.constant dense<0.000000e+00> : vector<32x484xf32>
    %4 = tpu.matmul %2, %3, %cst_5 {dimension_numbers = #tpu.dot_dimension_numbers<[1], [0], [0], [1], [0, 0, 1, 1], [], []>} : vector<32x128xf32>, vector<128x484xf32>, vector<32x484xf32> -> vector<32x484xf32>
    %c0_6 = arith.constant 0 : index
    %c0_7 = arith.constant 0 : index
    %5 = vector.load %arg3[%c0_6, %c0_7] : memref<4x484xf32, #tpu.memory_space<vmem>>, vector<4x484xf32>
    %6 = vector.extract_strided_slice %5 {offsets = [0, 0], sizes = [1, 484], strides = [1, 1]} : vector<4x484xf32> to vector<1x484xf32>
    %7 = vector.extract_strided_slice %4 {offsets = [0, 0], sizes = [8, 484], strides = [1, 1]} : vector<32x484xf32> to vector<8x484xf32>
    %8 = vector.broadcast %6 : vector<1x484xf32> to vector<8x484xf32>
    %9 = arith.mulf %8, %7 : vector<8x484xf32>
    %10 = vector.extract_strided_slice %5 {offsets = [1, 0], sizes = [1, 484], strides = [1, 1]} : vector<4x484xf32> to vector<1x484xf32>
    %11 = vector.extract_strided_slice %4 {offsets = [8, 0], sizes = [8, 484], strides = [1, 1]} : vector<32x484xf32> to vector<8x484xf32>
    %12 = vector.broadcast %10 : vector<1x484xf32> to vector<8x484xf32>
    %13 = arith.mulf %12, %11 : vector<8x484xf32>
    %14 = arith.addf %9, %13 : vector<8x484xf32>
    %15 = vector.extract_strided_slice %5 {offsets = [2, 0], sizes = [1, 484], strides = [1, 1]} : vector<4x484xf32> to vector<1x484xf32>
    %16 = vector.extract_strided_slice %4 {offsets = [16, 0], sizes = [8, 484], strides = [1, 1]} : vector<32x484xf32> to vector<8x484xf32>
    %17 = vector.broadcast %15 : vector<1x484xf32> to vector<8x484xf32>
    %18 = arith.mulf %17, %16 : vector<8x484xf32>
    %19 = arith.addf %14, %18 : vector<8x484xf32>
    %20 = vector.extract_strided_slice %5 {offsets = [3, 0], sizes = [1, 484], strides = [1, 1]} : vector<4x484xf32> to vector<1x484xf32>
    %21 = vector.extract_strided_slice %4 {offsets = [24, 0], sizes = [8, 484], strides = [1, 1]} : vector<32x484xf32> to vector<8x484xf32>
    %22 = vector.broadcast %20 : vector<1x484xf32> to vector<8x484xf32>
    %23 = arith.mulf %22, %21 : vector<8x484xf32>
    %24 = arith.addf %19, %23 : vector<8x484xf32>
    %c0_8 = arith.constant 0 : index
    %c0_9 = arith.constant 0 : index
    %25 = vector.load %arg1[%c0_8, %c0_9] : memref<8x1xf32, #tpu.memory_space<vmem>>, vector<8x1xf32>
    %26 = vector.broadcast %25 : vector<8x1xf32> to vector<8x484xf32>
    %27 = arith.addf %24, %26 : vector<8x484xf32>
    %cst_10 = arith.constant -3.61092138 : f32
    %cst_11 = arith.constant -2.6136508 : f32
    %28 = vector.broadcast %cst_10 : f32 to vector<8x484xf32>
    %29 = arith.maximumf %28, %27 : vector<8x484xf32>
    %30 = vector.broadcast %cst_11 : f32 to vector<8x484xf32>
    %31 = arith.minimumf %30, %29 : vector<8x484xf32>
    %c0_12 = arith.constant 0 : index
    %c0_13 = arith.constant 0 : index
    %c0_14 = arith.constant 0 : index
    %32 = vector.load %arg5[%c0_12, %c0_13, %c0_14] : memref<1x8x484xf32, #tpu.memory_space<vmem>>, vector<1x8x484xf32>
    %33 = vector.shape_cast %32 : vector<1x8x484xf32> to vector<8x484xf32>
    %34 = vector.shape_cast %31 : vector<8x484xf32> to vector<1x8x484xf32>
    tpu.vector_store %arg5[%c0_12, %c0_13, %c0_14], %34 {strides = array<i32>} : memref<1x8x484xf32, #tpu.memory_space<vmem>>, vector<1x8x484xf32>,
    return
  }
}

</mosaic_0001>

<llo_original>
// kernel: model_forward.1
$region0: #{model_forward.1}
  #allocation0 [shape = 'u32[]', space=smem, size = 0x4, offset = 0x4, fixed_abs, tag = 'smem constant byte address 0x4 - core index']
  #allocation1 [shape = 'u32[144,128]{1,0:T(1,128)}', space=vmem, size = 0x12000, scoped, tag = 'internal scratch']
  %s0 = inlined_call_operand.vmem [shape: f32[32,16], index: 0, kind: input, shape index: {}]
  %s1 = inlined_call_operand.vmem [shape: f32[8,1], index: 1, kind: input, shape index: {}]
  %s2 = inlined_call_operand.vmem [shape: f32[128,484], index: 2, kind: input, shape index: {}]
  %s3 = inlined_call_operand.vmem [shape: f32[4,484], index: 3, kind: input, shape index: {}]
  %s4 = inlined_call_operand.vmem [shape: f32[16,128], index: 4, kind: input, shape index: {}]
  %s5 = inlined_call_operand.hbm [shape: f32[1,8,484], index: 5, kind: output, shape index: {}]
  %s6 = sld [smem:[#allocation0]]
  $region30: #{model_forward.1} parent=0
    _
  %s8 = ssub.s32 1, %s6
  %s9 = scalar_select 0, %s8, %s6
  $region1: #{model_forward.1} parent=0
    #allocation2 [shape = 'u8[16384]{0}', space=vmem, size = 0x4000, scoped, tag = 'output window, operand 0, single buffered']
    #allocation3 [shape = 's32[1]{0}', space=sflag, size = 0x4, scoped, tag = 'scoped memory for model_forward.1']
    %10 = vsyncpa [#allocation3], 0
    // Predicated region
    $region2: #{model_forward.1} parent=1 // pred_check
      _
    $region3: #{model_forward.1} parent=1 // pred_check_branch
      %12 = sbr.rel (0) target = $region5
    $region4: #{model_forward.1} parent=1 // pred_region
      _
    $region5: #{model_forward.1} parent=1 // pred_fallthru
      _
    // Predicated region
    $region6: #{model_forward.1} parent=1 // pred_check
      _
    $region7: #{model_forward.1} parent=1 // pred_check_branch
      %14 = sbr.rel (0) target = $region9
    $region8: #{model_forward.1} parent=1 // pred_region
      _
    $region9: #{model_forward.1} parent=1 // pred_fallthru
      _
    // Predicated region
    $region10: #{model_forward.1} parent=1 // pred_check
      _
    $region11: #{model_forward.1} parent=1 // pred_check_branch
      %16 = sbr.rel (0) target = $region13
    $region12: #{model_forward.1} parent=1 // pred_region
      _
    $region13: #{model_forward.1} parent=1 // pred_fallthru
      _
    // Predicated region
    $region14: #{model_forward.1} parent=1 // pred_check
      _
    $region15: #{model_forward.1} parent=1 // pred_check_branch
      %18 = sbr.rel (0) target = $region17
    $region16: #{model_forward.1} parent=1 // pred_region
      _
    $region17: #{model_forward.1} parent=1 // pred_fallthru
      _
    // Predicated region
    $region18: #{model_forward.1} parent=1 // pred_check
      _
    $region19: #{model_forward.1} parent=1 // pred_check_branch
      %20 = sbr.rel (0) target = $region21
    $region20: #{model_forward.1} parent=1 // pred_region
      _
    $region21: #{model_forward.1} parent=1 // pred_fallthru
      _
    %v21 = vld [vmem:[%s0] sm:$0xff]
    %v22 = vld [vmem:[%s0 + $0x8] sm:$0xff]
    %v23 = vld [vmem:[%s0 + $0x10] sm:$0xff]
    %v24 = vld [vmem:[%s0 + $0x18] sm:$0xff]
    %v25 = vld [vmem:[%s4] sm:$0xff]
    %v26 = vld [vmem:[%s4 + $0x8] sm:$0xff]
    %vm27 = vcmask 130048
    %v29 = vsel %vm27, %v21, 0
    %v32 = vsel %vm27, %v22, 0
    %v35 = vsel %vm27, %v23, 0
    %v38 = vsel %vm27, %v24, 0
    %40 = vmatprep.subr.mxu0 0.0
    %41 = vmatpush1.msra.mxu0 0.0
    %42 = vmatprep.subr.mxu0 0.0
    %43 = vmatpush1.msra.mxu0 0.0
    %44 = vmatprep.subr.mxu0 0.0
    %45 = vmatpush1.msra.mxu0 0.0
    %46 = vmatprep.subr.mxu0 0.0
    %47 = vmatpush1.msra.mxu0 0.0
    %48 = vmatprep.subr.mxu0 0.0
    %49 = vmatpush1.msra.mxu0 0.0
    %50 = vmatprep.subr.mxu0 0.0
    %51 = vmatpush1.msra.mxu0 0.0
    %52 = vmatprep.subr.mxu0 0.0
    %53 = vmatpush1.msra.mxu0 0.0
    %54 = vmatprep.subr.mxu0 0.0
    %55 = vmatpush1.msra.mxu0 0.0
    %56 = vmatprep.subr.mxu0 0.0
    %57 = vmatpush1.msra.mxu0 0.0
    %58 = vmatprep.subr.mxu0 0.0
    %59 = vmatpush1.msra.mxu0 0.0
    %60 = vmatprep.subr.mxu0 0.0
    %61 = vmatpush1.msra.mxu0 0.0
    %62 = vmatprep.subr.mxu0 0.0
    %63 = vmatpush1.msra.mxu0 0.0
    %64 = vmatprep.subr.mxu0 0.0
    %65 = vmatpush1.msra.mxu0 0.0
    %66 = vmatprep.subr.mxu0 0.0
    %67 = vmatpush1.msra.mxu0 0.0
    %68 = vmatprep.subr.mxu0 0.0
    %69 = vmatpush1.msra.mxu0 %v26
    %70 = vmatprep.subr.mxu0 0.0
    %71 = vmatpush1.msra.mxu0 %v25
    %72 = vmatprep.subr.mxu0 0.0
    %73 = vmatpush2.msra.mxu0 0.0
    %74 = vmatprep.subr.mxu0 0.0
    %75 = vmatpush2.msra.mxu0 0.0
    %76 = vmatprep.subr.mxu0 0.0
    %77 = vmatpush2.msra.mxu0 0.0
    %78 = vmatprep.subr.mxu0 0.0
    %79 = vmatpush2.msra.mxu0 0.0
    %80 = vmatprep.subr.mxu0 0.0
    %81 = vmatpush2.msra.mxu0 0.0
    %82 = vmatprep.subr.mxu0 0.0
    %83 = vmatpush2.msra.mxu0 0.0
    %84 = vmatprep.subr.mxu0 0.0
    %85 = vmatpush2.msra.mxu0 0.0
    %86 = vmatprep.subr.mxu0 0.0
    %87 = vmatpush2.msra.mxu0 0.0
    %88 = vmatprep.subr.mxu0 0.0
    %89 = vmatpush2.msra.mxu0 0.0
    %90 = vmatprep.subr.mxu0 0.0
    %91 = vmatpush2.msra.mxu0 0.0
    %92 = vmatprep.subr.mxu0 0.0
    %93 = vmatpush2.msra.mxu0 0.0
    %94 = vmatprep.subr.mxu0 0.0
    %95 = vmatpush2.msra.mxu0 0.0
    %96 = vmatprep.subr.mxu0 0.0
    %97 = vmatpush2.msra.mxu0 0.0
    %98 = vmatprep.subr.mxu0 0.0
    %99 = vmatpush2.msra.mxu0 0.0
    %100 = vmatprep.subr.mxu0 0.0
    %101 = vmatpush2.msra.mxu0 0.0
    %102 = vmatprep.subr.mxu0 0.0
    %103 = vmatpush2.msra.mxu0 0.0
    %104 = vmatprep.mubr.f32.mxu0 0.0
    %105 = vmatmul.mubr.f32.gmra.mxu0 %v29
    %v106 = vpop.f32.mrf.mxu0
    %v107 = vadd.f32 0.0, %v106
    %v108 = vpop.f32.mrf.mxu0
    %109 = vmatprep.mubr.f32.mxu0 0.0
    %110 = vmatmul.mubr.f32.gmra.mxu0 %v32
    %v111 = vpop.f32.mrf.mxu0
    %v112 = vadd.f32 0.0, %v111
    %v113 = vpop.f32.mrf.mxu0
    %114 = vmatprep.mubr.f32.mxu0 0.0
    %115 = vmatmul.mubr.f32.gmra.mxu0 %v35
    %v116 = vpop.f32.mrf.mxu0
    %v117 = vadd.f32 0.0, %v116
    %v118 = vpop.f32.mrf.mxu0
    %119 = vmatprep.mubr.f32.mxu0 0.0
    %120 = vmatmul.mubr.f32.gmra.mxu0 %v38
    %v121 = vpop.f32.mrf.mxu0
    %v122 = vadd.f32 0.0, %v121
    %v123 = vpop.f32.mrf.mxu0
    %124 = vdwg.mxu0
    %v125 = vld [vmem:[%s2] sm:$0xff]
    %v126 = vld [vmem:[%s2 + $0x8] sm:$0xff]
    %v127 = vld [vmem:[%s2 + $0x10] sm:$0xff]
    %v128 = vld [vmem:[%s2 + $0x18] sm:$0xff]
    %v129 = vld [vmem:[%s2 + $0x20] sm:$0xff]
    %v130 = vld [vmem:[%s2 + $0x28] sm:$0xff]
    %v131 = vld [vmem:[%s2 + $0x30] sm:$0xff]
    %v132 = vld [vmem:[%s2 + $0x38] sm:$0xff]
    %v133 = vld [vmem:[%s2 + $0x40] sm:$0xff]
    %v134 = vld [vmem:[%s2 + $0x48] sm:$0xff]
    %v135 = vld [vmem:[%s2 + $0x50] sm:$0xff]
    %v136 = vld [vmem:[%s2 + $0x58] sm:$0xff]
    %v137 = vld [vmem:[%s2 + $0x60] sm:$0xff]
    %v138 = vld [vmem:[%s2 + $0x68] sm:$0xff]
    %v139 = vld [vmem:[%s2 + $0x70] sm:$0xff]
    %v140 = vld [vmem:[%s2 + $0x78] sm:$0xff]
    %v141 = vld [vmem:[%s2 + $0x80] sm:$0xff]
    %v142 = vld [vmem:[%s2 + $0x88] sm:$0xff]
    %v143 = vld [vmem:[%s2 + $0x90] sm:$0xff]
    %v144 = vld [vmem:[%s2 + $0x98] sm:$0xff]
    %v145 = vld [vmem:[%s2 + $0xa0] sm:$0xff]
    %v146 = vld [vmem:[%s2 + $0xa8] sm:$0xff]
    %v147 = vld [vmem:[%s2 + $0xb0] sm:$0xff]
    %v148 = vld [vmem:[%s2 + $0xb8] sm:$0xff]
    %v149 = vld [vmem:[%s2 + $0xc0] sm:$0xff]
    %v150 = vld [vmem:[%s2 + $0xc8] sm:$0xff]
    %v151 = vld [vmem:[%s2 + $0xd0] sm:$0xff]
    %v152 = vld [vmem:[%s2 + $0xd8] sm:$0xff]
    %v153 = vld [vmem:[%s2 + $0xe0] sm:$0xff]
    %v154 = vld [vmem:[%s2 + $0xe8] sm:$0xff]
    %v155 = vld [vmem:[%s2 + $0xf0] sm:$0xff]
    %v156 = vld [vmem:[%s2 + $0xf8] sm:$0xff]
    %v157 = vld [vmem:[%s2 + $0x100] sm:$0xff]
    %v158 = vld [vmem:[%s2 + $0x108] sm:$0xff]
    %v159 = vld [vmem:[%s2 + $0x110] sm:$0xff]
    %v160 = vld [vmem:[%s2 + $0x118] sm:$0xff]
    %v161 = vld [vmem:[%s2 + $0x120] sm:$0xff]
    %v162 = vld [vmem:[%s2 + $0x128] sm:$0xff]
    %v163 = vld [vmem:[%s2 + $0x130] sm:$0xff]
    %v164 = vld [vmem:[%s2 + $0x138] sm:$0xff]
    %v165 = vld [vmem:[%s2 + $0x140] sm:$0xff]
    %v166 = vld [vmem:[%s2 + $0x148] sm:$0xff]
    %v167 = vld [vmem:[%s2 + $0x150] sm:$0xff]
    %v168 = vld [vmem:[%s2 + $0x158] sm:$0xff]
    %v169 = vld [vmem:[%s2 + $0x160] sm:$0xff]
    %v170 = vld [vmem:[%s2 + $0x168] sm:$0xff]
    %v171 = vld [vmem:[%s2 + $0x170] sm:$0xff]
    %v172 = vld [vmem:[%s2 + $0x178] sm:$0xff]
    %v173 = vld [vmem:[%s2 + $0x180] sm:$0xff]
    %v174 = vld [vmem:[%s2 + $0x188] sm:$0xff]
    %v175 = vld [vmem:[%s2 + $0x190] sm:$0xff]
    %v176 = vld [vmem:[%s2 + $0x198] sm:$0xff]
    %v177 = vld [vmem:[%s2 + $0x1a0] sm:$0xff]
    %v178 = vld [vmem:[%s2 + $0x1a8] sm:$0xff]
    %v179 = vld [vmem:[%s2 + $0x1b0] sm:$0xff]
    %v180 = vld [vmem:[%s2 + $0x1b8] sm:$0xff]
    %v181 = vld [vmem:[%s2 + $0x1c0] sm:$0xff]
    %v182 = vld [vmem:[%s2 + $0x1c8] sm:$0xff]
    %v183 = vld [vmem:[%s2 + $0x1d0] sm:$0xff]
    %v184 = vld [vmem:[%s2 + $0x1d8] sm:$0xff]
    %v185 = vld [vmem:[%s2 + $0x1e0] sm:$0xff]
    %v186 = vld [vmem:[%s2 + $0x1e8] sm:$0xff]
    %v187 = vld [vmem:[%s2 + $0x1f0] sm:$0xff]
    %v188 = vld [vmem:[%s2 + $0x1f8] sm:$0xff]
    %189 = vmatprep.subr.mxu0 %v186
    %190 = vmatpush1.msra.mxu0 %v185
    %191 = vmatprep.subr.mxu0 %v182
    %192 = vmatpush1.msra.mxu0 %v181
    %193 = vmatprep.subr.mxu0 %v178
    %194 = vmatpush1.msra.mxu0 %v177
    %195 = vmatprep.subr.mxu0 %v174
    %196 = vmatpush1.msra.mxu0 %v173
    %197 = vmatprep.subr.mxu0 %v170
    %198 = vmatpush1.msra.mxu0 %v169
    %199 = vmatprep.subr.mxu0 %v166
    %200 = vmatpush1.msra.mxu0 %v165
    %201 = vmatprep.subr.mxu0 %v162
    %202 = vmatpush1.msra.mxu0 %v161
    %203 = vmatprep.subr.mxu0 %v158
    %204 = vmatpush1.msra.mxu0 %v157
    %205 = vmatprep.subr.mxu0 %v154
    %206 = vmatpush1.msra.mxu0 %v153
    %207 = vmatprep.subr.mxu0 %v150
    %208 = vmatpush1.msra.mxu0 %v149
    %209 = vmatprep.subr.mxu0 %v146
    %210 = vmatpush1.msra.mxu0 %v145
    %211 = vmatprep.subr.mxu0 %v142
    %212 = vmatpush1.msra.mxu0 %v141
    %213 = vmatprep.subr.mxu0 %v138
    %214 = vmatpush1.msra.mxu0 %v137
    %215 = vmatprep.subr.mxu0 %v134
    %216 = vmatpush1.msra.mxu0 %v133
    %217 = vmatprep.subr.mxu0 %v130
    %218 = vmatpush1.msra.mxu0 %v129
    %219 = vmatprep.subr.mxu0 %v126
    %220 = vmatpush1.msra.mxu0 %v125
    %221 = vmatprep.subr.mxu0 0.0
    %222 = vmatpush2.msra.mxu0 0.0
    %223 = vmatprep.subr.mxu0 0.0
    %224 = vmatpush2.msra.mxu0 0.0
    %225 = vmatprep.subr.mxu0 0.0
    %226 = vmatpush2.msra.mxu0 0.0
    %227 = vmatprep.subr.mxu0 0.0
    %228 = vmatpush2.msra.mxu0 0.0
    %229 = vmatprep.subr.mxu0 0.0
    %230 = vmatpush2.msra.mxu0 0.0
    %231 = vmatprep.subr.mxu0 0.0
    %232 = vmatpush2.msra.mxu0 0.0
    %233 = vmatprep.subr.mxu0 0.0
    %234 = vmatpush2.msra.mxu0 0.0
    %235 = vmatprep.subr.mxu0 0.0
    %236 = vmatpush2.msra.mxu0 0.0
    %237 = vmatprep.subr.mxu0 0.0
    %238 = vmatpush2.msra.mxu0 0.0
    %239 = vmatprep.subr.mxu0 0.0
    %240 = vmatpush2.msra.mxu0 0.0
    %241 = vmatprep.subr.mxu0 0.0
    %242 = vmatpush2.msra.mxu0 0.0
    %243 = vmatprep.subr.mxu0 0.0
    %244 = vmatpush2.msra.mxu0 0.0
    %245 = vmatprep.subr.mxu0 0.0
    %246 = vmatpush2.msra.mxu0 0.0
    %247 = vmatprep.subr.mxu0 0.0
    %248 = vmatpush2.msra.mxu0 0.0
    %249 = vmatprep.subr.mxu0 0.0
    %250 = vmatpush2.msra.mxu0 0.0
    %251 = vmatprep.subr.mxu0 0.0
    %252 = vmatpush2.msra.mxu0 0.0
    %253 = vmatprep.mubr.f32.mxu0 0.0
    %254 = vmatmul.mubr.f32.gmra.mxu0 %v107
    %v255 = vpop.f32.mrf.mxu0
    %v256 = vadd.f32 0.0, %v255
    %v257 = vpop.f32.mrf.mxu0
    %v258 = vadd.f32 0.0, %v257
    %259 = vmatprep.mubr.f32.mxu0 0.0
    %260 = vmatmul.mubr.f32.gmra.mxu0 %v112
    %v261 = vpop.f32.mrf.mxu0
    %v262 = vadd.f32 0.0, %v261
    %v263 = vpop.f32.mrf.mxu0
    %v264 = vadd.f32 0.0, %v263
    %265 = vmatprep.mubr.f32.mxu0 0.0
    %266 = vmatmul.mubr.f32.gmra.mxu0 %v117
    %v267 = vpop.f32.mrf.mxu0
    %v268 = vadd.f32 0.0, %v267
    %v269 = vpop.f32.mrf.mxu0
    %v270 = vadd.f32 0.0, %v269
    %271 = vmatprep.mubr.f32.mxu0 0.0
    %272 = vmatmul.mubr.f32.gmra.mxu0 %v122
    %v273 = vpop.f32.mrf.mxu0
    %v274 = vadd.f32 0.0, %v273
    %v275 = vpop.f32.mrf.mxu0
    %v276 = vadd.f32 0.0, %v275
    %277 = vdwg.mxu0
    %278 = vmatprep.subr.mxu0 %v188
    %279 = vmatpush1.msra.mxu0 %v187
    %280 = vmatprep.subr.mxu0 %v184
    %281 = vmatpush1.msra.mxu0 %v183
    %282 = vmatprep.subr.mxu0 %v180
    %283 = vmatpush1.msra.mxu0 %v179
    %284 = vmatprep.subr.mxu0 %v176
    %285 = vmatpush1.msra.mxu0 %v175
    %286 = vmatprep.subr.mxu0 %v172
    %287 = vmatpush1.msra.mxu0 %v171
    %288 = vmatprep.subr.mxu0 %v168
    %289 = vmatpush1.msra.mxu0 %v167
    %290 = vmatprep.subr.mxu0 %v164
    %291 = vmatpush1.msra.mxu0 %v163
    %292 = vmatprep.subr.mxu0 %v160
    %293 = vmatpush1.msra.mxu0 %v159
    %294 = vmatprep.subr.mxu0 %v156
    %295 = vmatpush1.msra.mxu0 %v155
    %296 = vmatprep.subr.mxu0 %v152
    %297 = vmatpush1.msra.mxu0 %v151
    %298 = vmatprep.subr.mxu0 %v148
    %299 = vmatpush1.msra.mxu0 %v147
    %300 = vmatprep.subr.mxu0 %v144
    %301 = vmatpush1.msra.mxu0 %v143
    %302 = vmatprep.subr.mxu0 %v140
    %303 = vmatpush1.msra.mxu0 %v139
    %304 = vmatprep.subr.mxu0 %v136
    %305 = vmatpush1.msra.mxu0 %v135
    %306 = vmatprep.subr.mxu0 %v132
    %307 = vmatpush1.msra.mxu0 %v131
    %308 = vmatprep.subr.mxu0 %v128
    %309 = vmatpush1.msra.mxu0 %v127
    %310 = vmatprep.subr.mxu0 0.0
    %311 = vmatpush2.msra.mxu0 0.0
    %312 = vmatprep.subr.mxu0 0.0
    %313 = vmatpush2.msra.mxu0 0.0
    %314 = vmatprep.subr.mxu0 0.0
    %315 = vmatpush2.msra.mxu0 0.0
    %316 = vmatprep.subr.mxu0 0.0
    %317 = vmatpush2.msra.mxu0 0.0
    %318 = vmatprep.subr.mxu0 0.0
    %319 = vmatpush2.msra.mxu0 0.0
    %320 = vmatprep.subr.mxu0 0.0
    %321 = vmatpush2.msra.mxu0 0.0
    %322 = vmatprep.subr.mxu0 0.0
    %323 = vmatpush2.msra.mxu0 0.0
    %324 = vmatprep.subr.mxu0 0.0
    %325 = vmatpush2.msra.mxu0 0.0
    %326 = vmatprep.subr.mxu0 0.0
    %327 = vmatpush2.msra.mxu0 0.0
    %328 = vmatprep.subr.mxu0 0.0
    %329 = vmatpush2.msra.mxu0 0.0
    %330 = vmatprep.subr.mxu0 0.0
    %331 = vmatpush2.msra.mxu0 0.0
    %332 = vmatprep.subr.mxu0 0.0
    %333 = vmatpush2.msra.mxu0 0.0
    %334 = vmatprep.subr.mxu0 0.0
    %335 = vmatpush2.msra.mxu0 0.0
    %336 = vmatprep.subr.mxu0 0.0
    %337 = vmatpush2.msra.mxu0 0.0
    %338 = vmatprep.subr.mxu0 0.0
    %339 = vmatpush2.msra.mxu0 0.0
    %340 = vmatprep.subr.mxu0 0.0
    %341 = vmatpush2.msra.mxu0 0.0
    %342 = vmatprep.mubr.f32.mxu0 0.0
    %343 = vmatmul.mubr.f32.gmra.mxu0 %v107
    %v344 = vpop.f32.mrf.mxu0
    %v345 = vadd.f32 0.0, %v344
    %v346 = vpop.f32.mrf.mxu0
    %v347 = vadd.f32 0.0, %v346
    %348 = vmatprep.mubr.f32.mxu0 0.0
    %349 = vmatmul.mubr.f32.gmra.mxu0 %v112
    %v350 = vpop.f32.mrf.mxu0
    %v351 = vadd.f32 0.0, %v350
    %v352 = vpop.f32.mrf.mxu0
    %v353 = vadd.f32 0.0, %v352
    %354 = vmatprep.mubr.f32.mxu0 0.0
    %355 = vmatmul.mubr.f32.gmra.mxu0 %v117
    %v356 = vpop.f32.mrf.mxu0
    %v357 = vadd.f32 0.0, %v356
    %v358 = vpop.f32.mrf.mxu0
    %v359 = vadd.f32 0.0, %v358
    %360 = vmatprep.mubr.f32.mxu0 0.0
    %361 = vmatmul.mubr.f32.gmra.mxu0 %v122
    %v362 = vpop.f32.mrf.mxu0
    %v363 = vadd.f32 0.0, %v362
    %v364 = vpop.f32.mrf.mxu0
    %v365 = vadd.f32 0.0, %v364
    %366 = vdwg.mxu0
    %v367 = vld [vmem:[%s3] sm:$0xff]
    %v368 = vld [vmem:[%s3 + $0x8] sm:$0xff]
    %v371 = vlaneseq
    %v372 = vshrl.u32 %v371, 7
    %v373 = vsub.s32 0, %v372
    %v374 = vrot.slane %v367, %v373
    %v375 = vlaneseq
    %v376 = vshrl.u32 %v375, 7
    %v377 = vsub.s32 4, %v376
    %v378 = vrot.slane %v367, %v377
    %v379 = vlaneseq
    %v380 = vshrl.u32 %v379, 7
    %v381 = vsub.s32 0, %v380
    %v382 = vrot.slane %v368, %v381
    %v383 = vlaneseq
    %v384 = vshrl.u32 %v383, 7
    %v385 = vsub.s32 4, %v384
    %v386 = vrot.slane %v368, %v385
    %v391 = vlaneseq
    %v392 = vshrl.u32 %v391, 7
    %v393 = vsub.s32 0, %v392
    %v394 = vrot.slane %v374, %v393
    %v395 = vlaneseq
    %v396 = vshrl.u32 %v395, 7
    %v397 = vsub.s32 0, %v396
    %v398 = vrot.slane %v378, %v397
    %v399 = vlaneseq
    %v400 = vshrl.u32 %v399, 7
    %v401 = vsub.s32 0, %v400
    %v402 = vrot.slane %v382, %v401
    %v403 = vlaneseq
    %v404 = vshrl.u32 %v403, 7
    %v405 = vsub.s32 0, %v404
    %v406 = vrot.slane %v386, %v405
    %v407 = vmul.f32 %v394, %v256
    %v408 = vmul.f32 %v398, %v258
    %v409 = vmul.f32 %v402, %v345
    %v410 = vmul.f32 %v406, %v347
    %v411 = vlaneseq
    %v412 = vshrl.u32 %v411, 7
    %v413 = vsub.s32 1, %v412
    %v414 = vrot.slane %v367, %v413
    %v415 = vlaneseq
    %v416 = vshrl.u32 %v415, 7
    %v417 = vsub.s32 5, %v416
    %v418 = vrot.slane %v367, %v417
    %v419 = vlaneseq
    %v420 = vshrl.u32 %v419, 7
    %v421 = vsub.s32 1, %v420
    %v422 = vrot.slane %v368, %v421
    %v423 = vlaneseq
    %v424 = vshrl.u32 %v423, 7
    %v425 = vsub.s32 5, %v424
    %v426 = vrot.slane %v368, %v425
    %v431 = vlaneseq
    %v432 = vshrl.u32 %v431, 7
    %v433 = vsub.s32 1, %v432
    %v434 = vrot.slane %v414, %v433
    %v435 = vlaneseq
    %v436 = vshrl.u32 %v435, 7
    %v437 = vsub.s32 1, %v436
    %v438 = vrot.slane %v418, %v437
    %v439 = vlaneseq
    %v440 = vshrl.u32 %v439, 7
    %v441 = vsub.s32 1, %v440
    %v442 = vrot.slane %v422, %v441
    %v443 = vlaneseq
    %v444 = vshrl.u32 %v443, 7
    %v445 = vsub.s32 1, %v444
    %v446 = vrot.slane %v426, %v445
    %v447 = vmul.f32 %v434, %v262
    %v448 = vmul.f32 %v438, %v264
    %v449 = vmul.f32 %v442, %v351
    %v450 = vmul.f32 %v446, %v353
    %v451 = vadd.f32 %v407, %v447
    %v452 = vadd.f32 %v408, %v448
    %v453 = vadd.f32 %v409, %v449
    %v454 = vadd.f32 %v410, %v450
    %v455 = vlaneseq
    %v456 = vshrl.u32 %v455, 7
    %v457 = vsub.s32 2, %v456
    %v458 = vrot.slane %v367, %v457
    %v459 = vlaneseq
    %v460 = vshrl.u32 %v459, 7
    %v461 = vsub.s32 6, %v460
    %v462 = vrot.slane %v367, %v461
    %v463 = vlaneseq
    %v464 = vshrl.u32 %v463, 7
    %v465 = vsub.s32 2, %v464
    %v466 = vrot.slane %v368, %v465
    %v467 = vlaneseq
    %v468 = vshrl.u32 %v467, 7
    %v469 = vsub.s32 6, %v468
    %v470 = vrot.slane %v368, %v469
    %v475 = vlaneseq
    %v476 = vshrl.u32 %v475, 7
    %v477 = vsub.s32 2, %v476
    %v478 = vrot.slane %v458, %v477
    %v479 = vlaneseq
    %v480 = vshrl.u32 %v479, 7
    %v481 = vsub.s32 2, %v480
    %v482 = vrot.slane %v462, %v481
    %v483 = vlaneseq
    %v484 = vshrl.u32 %v483, 7
    %v485 = vsub.s32 2, %v484
    %v486 = vrot.slane %v466, %v485
    %v487 = vlaneseq
    %v488 = vshrl.u32 %v487, 7
    %v489 = vsub.s32 2, %v488
    %v490 = vrot.slane %v470, %v489
    %v491 = vmul.f32 %v478, %v268
    %v492 = vmul.f32 %v482, %v270
    %v493 = vmul.f32 %v486, %v357
    %v494 = vmul.f32 %v490, %v359
    %v495 = vadd.f32 %v451, %v491
    %v496 = vadd.f32 %v452, %v492
    %v497 = vadd.f32 %v453, %v493
    %v498 = vadd.f32 %v454, %v494
    %v499 = vlaneseq
    %v500 = vshrl.u32 %v499, 7
    %v501 = vsub.s32 3, %v500
    %v502 = vrot.slane %v367, %v501
    %v503 = vlaneseq
    %v504 = vshrl.u32 %v503, 7
    %v505 = vsub.s32 7, %v504
    %v506 = vrot.slane %v367, %v505
    %v507 = vlaneseq
    %v508 = vshrl.u32 %v507, 7
    %v509 = vsub.s32 3, %v508
    %v510 = vrot.slane %v368, %v509
    %v511 = vlaneseq
    %v512 = vshrl.u32 %v511, 7
    %v513 = vsub.s32 7, %v512
    %v514 = vrot.slane %v368, %v513
    %v519 = vlaneseq
    %v520 = vshrl.u32 %v519, 7
    %v521 = vsub.s32 3, %v520
    %v522 = vrot.slane %v502, %v521
    %v523 = vlaneseq
    %v524 = vshrl.u32 %v523, 7
    %v525 = vsub.s32 3, %v524
    %v526 = vrot.slane %v506, %v525
    %v527 = vlaneseq
    %v528 = vshrl.u32 %v527, 7
    %v529 = vsub.s32 3, %v528
    %v530 = vrot.slane %v510, %v529
    %v531 = vlaneseq
    %v532 = vshrl.u32 %v531, 7
    %v533 = vsub.s32 3, %v532
    %v534 = vrot.slane %v514, %v533
    %v535 = vmul.f32 %v522, %v274
    %v536 = vmul.f32 %v526, %v276
    %v537 = vmul.f32 %v530, %v363
    %v538 = vmul.f32 %v534, %v365
    %v539 = vadd.f32 %v495, %v535
    %v540 = vadd.f32 %v496, %v536
    %v541 = vadd.f32 %v497, %v537
    %v542 = vadd.f32 %v498, %v538
    %v543 = vld [vmem:[%s1] sm:$0xff]
    %545 = vset.pattern.permute.xlu0 0
    %546 = vperm.xlu0 %545, %v543
    %v547 = vpop.permute.xlu0 %546
    %v549 = vadd.f32 %v539, %v547
    %v550 = vadd.f32 %v540, %v547
    %v551 = vadd.f32 %v541, %v547
    %v552 = vadd.f32 %v542, %v547
    %v553 = vmax.f32 %v549, -3.6109214
    %v554 = vmax.f32 %v550, -3.6109214
    %v555 = vmax.f32 %v551, -3.6109214
    %v556 = vmax.f32 %v552, -3.6109214
    %v557 = vmin.f32 %v553, -2.6136508
    %v558 = vmin.f32 %v554, -2.6136508
    %v559 = vmin.f32 %v555, -2.6136508
    %v560 = vmin.f32 %v556, -2.6136508
    %561 = vst [vmem:[#allocation2] sm:$0xff] %v557
    %562 = vst [vmem:[#allocation2 + $0x8] sm:$0xff] %v558
    %563 = vst [vmem:[#allocation2 + $0x10] sm:$0xff] %v559
    %vm564 = vcmask 818176
    %565 = vst.msk [vmem:[#allocation2 + $0x18] sm:$0xff] %vm564, %v560
    // Predicated region
    $region22: #{model_forward.1} parent=1 // pred_check
      _
    $region23: #{model_forward.1} parent=1 // pred_check_branch
      %567 = sbr.rel (0) target = $region25
    $region24: #{model_forward.1} parent=1 // pred_region
      %s569 = ssub.s32 512, 512
      %570 = vsyncadd [#allocation3], %s569
      %s572 = sshll.u32 [#allocation2], 4
      %s573 = int_to_ptr.vmem [resolvable:$true] %s572
      %575 = dma.vmem_to_hbm [thread:$0]  %s573, 512, %s5, [#allocation3]
    $region25: #{model_forward.1} parent=1 // pred_fallthru
      _
    // Predicated region
    $region26: #{model_forward.1} parent=1 // pred_check
      _
    $region27: #{model_forward.1} parent=1 // pred_check_branch
      %577 = sbr.rel (0) target = $region29
    $region28: #{model_forward.1} parent=1 // pred_region
      %578 = dma.done [#allocation3], 512
    $region29: #{model_forward.1} parent=1 // pred_fallthru
      _
    %579 = vsyncpa [#allocation3], 1

</llo_original>
